<compile_context>
chip_gen: v7x
topology: tpu7x:2x2x1
jax: 0.10.0
libtpu: 0.0.40
codegen_flags: <defaults>
</compile_context>

<pallas_src>
import jax
import jax.numpy as jnp
from jax.experimental import pallas as pl
from jax.experimental.pallas import tpu as pltpu

LANES = 128
MAX_BLOCK_BYTES = 2 * 1024 * 1024   # per-input VMEM block target (2 MiB)
NUM_SPLITS = 2                      # outer "parallel" axis (2 TCs on v7x)
NEG_PAD = -1.0e4                    # sigmoid/softplus/BCE of this are exactly 0


def _dice_bce_kernel(x_ref, t_ref, out_ref):
    """Streams (G, sublanes, 128) blocks of logits/targets; the resident
    output block (1, 3, sublanes, 128) accumulates per-(sublane, lane) partial
    sums of [p*t, p+t, weighted BCE] across the inner (arbitrary) grid axis."""
    i = pl.program_id(1)

    @pl.when(i == 0)
    def _():
        out_ref[...] = jnp.zeros_like(out_ref)

    x = x_ref[...].astype(jnp.float32)
    t = t_ref[...].astype(jnp.float32)

    # Logit-space math.  For padded elements (x = -1e4, t = 0):
    #   e = 0, sp = 0, p = 0, bce = 0  -> zero contribution to every sum.
    e = jnp.exp(-jnp.abs(x))                        # EUP
    sp = jnp.maximum(x, 0.0) + jnp.log(1.0 + e)     # softplus(x)
    p = jnp.exp(x - sp)                             # sigmoid(x), no VPU divide
    w = jnp.where(t > 0.0, 0.96, 0.04)              # per-element BCE weight
    # -w*(t*log(p) + (1-t)*log(1-p)) == w*(softplus(x) - t*x)   (exact algebra;
    # differs from torch's -100 log clamp only when |x| > ~100).
    bce = w * (sp - t * x)

    # Reductions over the leading block axis are pure VPU adds (no XLU).
    out_ref[0, 0] += jnp.sum(p * t, axis=0)
    out_ref[0, 1] += jnp.sum(p + t, axis=0)
    out_ref[0, 2] += jnp.sum(bce, axis=0)


def dice_bce_loss(inputs, targets, smooth=1.0):
    """JAX/Pallas equivalent of DiceBCELoss.forward(inputs, targets, smooth)."""
    x = inputs.reshape(-1)
    t = targets.reshape(-1)
    n_valid = x.shape[0]

    # dtype-aware sublane packing: f32 -> 8, bf16 -> 16, int8/fp8 -> 32.
    itemsizes = (jnp.dtype(x.dtype).itemsize, jnp.dtype(t.dtype).itemsize)
    sublanes = max(8, 32 // min(itemsizes))
    group_elems = sublanes * LANES
    max_groups = max(1, MAX_BLOCK_BYTES // (group_elems * max(itemsizes)))
    block_groups = int(min(max_groups, pl.cdiv(n_valid, group_elems)))
    block_elems = block_groups * group_elems

    n_blocks = int(pl.cdiv(n_valid, block_elems))
    blocks_per_split = int(pl.cdiv(n_blocks, NUM_SPLITS))
    n_blocks_total = blocks_per_split * NUM_SPLITS
    n_total = n_blocks_total * block_elems

    pad = n_total - n_valid
    if pad:
        # Negative-pad logits / zero-pad targets: padded elements contribute
        # exactly zero to all three partial sums (no in-kernel mask needed).
        x = jnp.pad(x, (0, pad), constant_values=NEG_PAD)
        t = jnp.pad(t, (0, pad), constant_values=0)

    x3 = x.reshape(n_blocks_total * block_groups, sublanes, LANES)
    t3 = t.reshape(n_blocks_total * block_groups, sublanes, LANES)

    in_spec = pl.BlockSpec(
        (block_groups, sublanes, LANES),
        lambda s, i: (s * blocks_per_split + i, 0, 0),
    )
    out_spec = pl.BlockSpec(
        (1, 3, sublanes, LANES),
        lambda s, i: (s, 0, 0, 0),
    )

    partial = pl.pallas_call(
        _dice_bce_kernel,
        out_shape=jax.ShapeDtypeStruct(
            (NUM_SPLITS, 3, sublanes, LANES), jnp.float32),
        grid_spec=pltpu.PrefetchScalarGridSpec(
            num_scalar_prefetch=0,
            grid=(NUM_SPLITS, blocks_per_split),
            in_specs=[in_spec, in_spec],
            out_specs=out_spec,
        ),
        compiler_params=pltpu.CompilerParams(
            dimension_semantics=("parallel", "arbitrary"),
        ),
    )(x3, t3)

    # Tiny scalar epilogue in plain JAX: cross-lane/core reduction + dice/BCE.
    sums = jnp.sum(partial, axis=(0, 2, 3))   # [sum(p*t), sum(p)+sum(t), sum(bce)]
    dice = 1.0 - (2.0 * sums[0] + smooth) / (sums[1] + smooth)
    return sums[2] / n_valid + dice


def _reference(inputs, targets, smooth=1.0):
    """Pure-JAX mirror of the PyTorch module (incl. the -100 log clamp)."""
    p = jax.nn.sigmoid(inputs.astype(jnp.float32)).reshape(-1)
    t = targets.astype(jnp.float32).reshape(-1)
    w = jnp.where(t > 0, 0.96, 0.04)
    inter = jnp.sum(p * t)
    dice = 1.0 - (2.0 * inter + smooth) / (jnp.sum(p) + jnp.sum(t) + smooth)
    bce = jnp.mean(
        -w * (t * jnp.maximum(jnp.log(p), -100.0)
              + (1.0 - t) * jnp.maximum(jnp.log1p(-p), -100.0))
    )
    return bce + dice


if __name__ == "__main__":
    key = jax.random.PRNGKey(0)
    k1, k2, k3, k4 = jax.random.split(key, 4)

    # NCHW logits and binary targets, small shapes.
    inputs = jax.random.normal(k1, (2, 4, 16, 16), dtype=jnp.float32)
    targets = (jax.random.uniform(k2, (2, 4, 16, 16)) > 0.7).astype(jnp.float32)

    loss = dice_bce_loss(inputs, targets, smooth=1.0)
    jax.block_until_ready(loss)
    ref = _reference(inputs, targets, smooth=1.0)
    assert jnp.allclose(loss, ref, rtol=1e-4, atol=1e-5), (loss, ref)

    # Ragged case (N not a multiple of the block size) exercises the pad path.
    inputs2 = jax.random.normal(k3, (3, 3, 7, 5), dtype=jnp.float32)
    targets2 = (jax.random.uniform(k4, (3, 3, 7, 5)) > 0.5).astype(jnp.float32)
    loss2 = dice_bce_loss(inputs2, targets2, smooth=1.0)
    jax.block_until_ready(loss2)
    ref2 = _reference(inputs2, targets2, smooth=1.0)
    assert jnp.allclose(loss2, ref2, rtol=1e-4, atol=1e-5), (loss2, ref2)

    print("KERNEL_OK")
</pallas_src>

<mosaic_0001>
module attributes {stable_mosaic.version = 11 : i64} {
  func.func @_dice_bce_kernel(%arg0: i32, %arg1: i32, %arg2: memref<2x8x128xf32, #tpu.memory_space<vmem>>, %arg3: memref<2x8x128xf32, #tpu.memory_space<vmem>>, %arg4: memref<1x3x8x128xf32, #tpu.memory_space<vmem>>) attributes {dimension_semantics = [#tpu.dimension_semantics<parallel>, #tpu.dimension_semantics<arbitrary>], iteration_bounds = array<i64: 2, 1>, scalar_prefetch = 0 : i64, scratch_operands = 0 : i64, tpu.core_type = #tpu.core_type<tc>, window_params = [{transform_indices = @transform_0, window_bounds = array<i64: 2, 8, 128>}, {transform_indices = @transform_1, window_bounds = array<i64: 2, 8, 128>}, {transform_indices = @transform_2, window_bounds = array<i64: 1, 3, 8, 128>}]} {
    %c0_i32 = arith.constant 0 : i32
    %0 = arith.cmpi eq, %arg1, %c0_i32 : i32
    %1 = arith.extui %0 : i1 to i32
    %c0_i32_0 = arith.constant 0 : i32
    %2 = arith.cmpi ne, %1, %c0_i32_0 : i32
    scf.if %2 {
      %cst_36 = arith.constant 0.000000e+00 : f32
      %48 = vector.broadcast %cst_36 : f32 to vector<1x3x8x128xf32>
      %c0_37 = arith.constant 0 : index
      %c0_38 = arith.constant 0 : index
      %c0_39 = arith.constant 0 : index
      %c0_40 = arith.constant 0 : index
      %49 = vector.load %arg4[%c0_37, %c0_38, %c0_39, %c0_40] : memref<1x3x8x128xf32, #tpu.memory_space<vmem>>, vector<1x3x8x128xf32>
      tpu.vector_store %arg4[%c0_37, %c0_38, %c0_39, %c0_40], %48 {strides = array<i32>} : memref<1x3x8x128xf32, #tpu.memory_space<vmem>>, vector<1x3x8x128xf32>,
    } else {
    }
    %c0 = arith.constant 0 : index
    %c0_1 = arith.constant 0 : index
    %c0_2 = arith.constant 0 : index
    %3 = vector.load %arg2[%c0, %c0_1, %c0_2] : memref<2x8x128xf32, #tpu.memory_space<vmem>>, vector<2x8x128xf32>
    %c0_3 = arith.constant 0 : index
    %c0_4 = arith.constant 0 : index
    %c0_5 = arith.constant 0 : index
    %4 = vector.load %arg3[%c0_3, %c0_4, %c0_5] : memref<2x8x128xf32, #tpu.memory_space<vmem>>, vector<2x8x128xf32>
    %5 = math.absf %3 : vector<2x8x128xf32>
    %cst = arith.constant 0.000000e+00 : f32
    %6 = vector.broadcast %cst : f32 to vector<2x8x128xf32>
    %7 = arith.subf %6, %5 : vector<2x8x128xf32>
    %8 = math.exp %7 : vector<2x8x128xf32>
    %cst_6 = arith.constant 0.000000e+00 : f32
    %9 = vector.broadcast %cst_6 : f32 to vector<2x8x128xf32>
    %10 = arith.maximumf %3, %9 : vector<2x8x128xf32>
    %cst_7 = arith.constant 1.000000e+00 : f32
    %11 = vector.broadcast %cst_7 : f32 to vector<2x8x128xf32>
    %12 = arith.addf %11, %8 : vector<2x8x128xf32>
    %13 = math.log %12 : vector<2x8x128xf32>
    %14 = arith.addf %10, %13 : vector<2x8x128xf32>
    %15 = arith.subf %3, %14 : vector<2x8x128xf32>
    %16 = math.exp %15 : vector<2x8x128xf32>
    %cst_8 = arith.constant 0.000000e+00 : f32
    %17 = vector.broadcast %cst_8 : f32 to vector<2x8x128xf32>
    %18 = arith.cmpf ogt, %4, %17 : vector<2x8x128xf32>
    %cst_9 = arith.constant 0.959999978 : f32
    %cst_10 = arith.constant 4.000000e-02 : f32
    %19 = vector.broadcast %cst_9 : f32 to vector<2x8x128xf32>
    %20 = vector.broadcast %cst_10 : f32 to vector<2x8x128xf32>
    %21 = arith.select %18, %19, %20 : vector<2x8x128xi1>, vector<2x8x128xf32>
    %22 = arith.mulf %4, %3 : vector<2x8x128xf32>
    %23 = arith.subf %14, %22 : vector<2x8x128xf32>
    %24 = arith.mulf %21, %23 : vector<2x8x128xf32>
    %c0_11 = arith.constant 0 : index
    %c0_12 = arith.constant 0 : index
    %c0_13 = arith.constant 0 : index
    %c0_14 = arith.constant 0 : index
    %25 = vector.load %arg4[%c0_11, %c0_12, %c0_13, %c0_14] : memref<1x3x8x128xf32, #tpu.memory_space<vmem>>, vector<1x1x8x128xf32>
    %26 = vector.shape_cast %25 : vector<1x1x8x128xf32> to vector<8x128xf32>
    %27 = arith.mulf %16, %4 : vector<2x8x128xf32>
    %cst_15 = arith.constant dense<0.000000e+00> : vector<8x128xf32>
    %28 = vector.multi_reduction <add>, %27, %cst_15 [0] : vector<2x8x128xf32> to vector<8x128xf32>
    %29 = arith.addf %26, %28 : vector<8x128xf32>
    %c0_16 = arith.constant 0 : index
    %c0_17 = arith.constant 0 : index
    %c0_18 = arith.constant 0 : index
    %c0_19 = arith.constant 0 : index
    %30 = vector.load %arg4[%c0_16, %c0_17, %c0_18, %c0_19] : memref<1x3x8x128xf32, #tpu.memory_space<vmem>>, vector<1x1x8x128xf32>
    %31 = vector.shape_cast %30 : vector<1x1x8x128xf32> to vector<8x128xf32>
    %32 = vector.shape_cast %29 : vector<8x128xf32> to vector<1x1x8x128xf32>
    tpu.vector_store %arg4[%c0_16, %c0_17, %c0_18, %c0_19], %32 {strides = array<i32>} : memref<1x3x8x128xf32, #tpu.memory_space<vmem>>, vector<1x1x8x128xf32>,
    %c0_20 = arith.constant 0 : index
    %c1 = arith.constant 1 : index
    %c0_21 = arith.constant 0 : index
    %c0_22 = arith.constant 0 : index
    %33 = vector.load %arg4[%c0_20, %c1, %c0_21, %c0_22] : memref<1x3x8x128xf32, #tpu.memory_space<vmem>>, vector<1x1x8x128xf32>
    %34 = vector.shape_cast %33 : vector<1x1x8x128xf32> to vector<8x128xf32>
    %35 = arith.addf %16, %4 : vector<2x8x128xf32>
    %cst_23 = arith.constant dense<0.000000e+00> : vector<8x128xf32>
    %36 = vector.multi_reduction <add>, %35, %cst_23 [0] : vector<2x8x128xf32> to vector<8x128xf32>
    %37 = arith.addf %34, %36 : vector<8x128xf32>
    %c0_24 = arith.constant 0 : index
    %c1_25 = arith.constant 1 : index
    %c0_26 = arith.constant 0 : index
    %c0_27 = arith.constant 0 : index
    %38 = vector.load %arg4[%c0_24, %c1_25, %c0_26, %c0_27] : memref<1x3x8x128xf32, #tpu.memory_space<vmem>>, vector<1x1x8x128xf32>
    %39 = vector.shape_cast %38 : vector<1x1x8x128xf32> to vector<8x128xf32>
    %40 = vector.shape_cast %37 : vector<8x128xf32> to vector<1x1x8x128xf32>
    tpu.vector_store %arg4[%c0_24, %c1_25, %c0_26, %c0_27], %40 {strides = array<i32>} : memref<1x3x8x128xf32, #tpu.memory_space<vmem>>, vector<1x1x8x128xf32>,
    %c0_28 = arith.constant 0 : index
    %c2 = arith.constant 2 : index
    %c0_29 = arith.constant 0 : index
    %c0_30 = arith.constant 0 : index
    %41 = vector.load %arg4[%c0_28, %c2, %c0_29, %c0_30] : memref<1x3x8x128xf32, #tpu.memory_space<vmem>>, vector<1x1x8x128xf32>
    %42 = vector.shape_cast %41 : vector<1x1x8x128xf32> to vector<8x128xf32>
    %cst_31 = arith.constant dense<0.000000e+00> : vector<8x128xf32>
    %43 = vector.multi_reduction <add>, %24, %cst_31 [0] : vector<2x8x128xf32> to vector<8x128xf32>
    %44 = arith.addf %42, %43 : vector<8x128xf32>
    %c0_32 = arith.constant 0 : index
    %c2_33 = arith.constant 2 : index
    %c0_34 = arith.constant 0 : index
    %c0_35 = arith.constant 0 : index
    %45 = vector.load %arg4[%c0_32, %c2_33, %c0_34, %c0_35] : memref<1x3x8x128xf32, #tpu.memory_space<vmem>>, vector<1x1x8x128xf32>
    %46 = vector.shape_cast %45 : vector<1x1x8x128xf32> to vector<8x128xf32>
    %47 = vector.shape_cast %44 : vector<8x128xf32> to vector<1x1x8x128xf32>
    tpu.vector_store %arg4[%c0_32, %c2_33, %c0_34, %c0_35], %47 {strides = array<i32>} : memref<1x3x8x128xf32, #tpu.memory_space<vmem>>, vector<1x1x8x128xf32>,
    return
  }
  func.func @transform_0(%arg0: i32, %arg1: i32) -> (i32, i32, i32) {
    %c1_i32 = arith.constant 1 : i32
    %0 = arith.muli %arg0, %c1_i32 : i32
    %1 = arith.addi %0, %arg1 : i32
    %c0_i32 = arith.constant 0 : i32
    %c0_i32_0 = arith.constant 0 : i32
    %c0_i32_1 = arith.constant 0 : i32
    return %1, %c0_i32, %c0_i32_0 : i32, i32, i32
  }
  func.func @transform_1(%arg0: i32, %arg1: i32) -> (i32, i32, i32) {
    %c1_i32 = arith.constant 1 : i32
    %0 = arith.muli %arg0, %c1_i32 : i32
    %1 = arith.addi %0, %arg1 : i32
    %c0_i32 = arith.constant 0 : i32
    %c0_i32_0 = arith.constant 0 : i32
    %c0_i32_1 = arith.constant 0 : i32
    return %1, %c0_i32, %c0_i32_0 : i32, i32, i32
  }
  func.func @transform_2(%arg0: i32, %arg1: i32) -> (i32, i32, i32, i32) {
    %c0_i32 = arith.constant 0 : i32
    %c0_i32_0 = arith.constant 0 : i32
    %c0_i32_1 = arith.constant 0 : i32
    %c0_i32_2 = arith.constant 0 : i32
    return %arg0, %c0_i32, %c0_i32_0, %c0_i32_1 : i32, i32, i32, i32
  }
}

</mosaic_0001>

<llo_original>
// kernel: tpu_custom_call.1
$region0: #{tpu_custom_call.1}
  #allocation0 [shape = 'u32[]', space=smem, size = 0x4, offset = 0x4, fixed_abs, tag = 'smem constant byte address 0x4 - core index']
  #allocation1 [shape = 'u32[144,128]{1,0:T(1,128)}', space=vmem, size = 0x12000, scoped, tag = 'internal scratch']
  %s0 = inlined_call_operand.hbm [shape: f32[4,8,128], index: 0, kind: input, shape index: {}]
  %s1 = inlined_call_operand.hbm [shape: f32[4,8,128], index: 1, kind: input, shape index: {}]
  %s2 = inlined_call_operand.hbm [shape: f32[2,3,8,128], index: 2, kind: output, shape index: {}]
  %s3 = sld [smem:[#allocation0]]
  $region53: #{tpu_custom_call.1} parent=0
    _
  %s5 = ssub.s32 1, %s3
  %s6 = scalar_select 0, %s5, %s3
  $region1: #{tpu_custom_call.1} parent=0
    #allocation2 [shape = 'u8[16384]{0}', space=vmem, size = 0x4000, scoped, tag = 'input window, operand 0']
    #allocation3 [shape = 's32[2]{0}', space=sflag, size = 0x8, scoped, tag = 'scoped memory for tpu_custom_call.1']
    #allocation4 [shape = 's32[2]{0}', space=sflag, size = 0x8, scoped, tag = 'scoped memory for tpu_custom_call.1']
    #allocation5 [shape = 'u8[16384]{0}', space=vmem, size = 0x4000, scoped, tag = 'input window, operand 1']
    #allocation6 [shape = 's32[2]{0}', space=sflag, size = 0x8, scoped, tag = 'scoped memory for tpu_custom_call.1']
    #allocation7 [shape = 'u8[24576]{0}', space=vmem, size = 0x6000, scoped, tag = 'output window, operand 0']
    %7 = vsyncpa [#allocation3], 0
    %s8 = scalar_lea.sflag [#allocation3], 1
    %9 = vsyncpa %s8, 0
    %10 = vsyncpa [#allocation6], 0
    %s11 = scalar_lea.sflag [#allocation6], 1
    %12 = vsyncpa %s11, 0
    %13 = vsyncpa [#allocation4], 0
    %s14 = scalar_lea.sflag [#allocation4], 1
    %15 = vsyncpa %s14, 0
    loop: start=0, step=1, limit=4
    $region2: #{tpu_custom_call.1} parent=1 // loop_pre_header
      _
    $region3: #{tpu_custom_call.1} parent=1 // loop_header
      %s17 = sphi 0, %s21
      %p18 = scmp.ge.s32.totalorder %s17, 4
      %s24 = sphi 0, %s36
      %s25 = sphi 0, %s32
      %s26 = sphi 0, %s24
      %s27 = sphi 0, %s25
      %s28 = sphi 0, %s26
      %s29 = sphi 0, %s27
      %s41 = sphi 0, %s43
      %s44 = sphi 0, %s41
      %s45 = sphi 0, %s44
      %s61 = sphi 0, %s45
      %s69 = sphi 0, %s71
      %s72 = sphi 0, %s69
      %s73 = sphi 0, %s72
      %s89 = sphi 0, %s73
      %s95 = sphi 0, %s97
      %s98 = sphi 0, %s95
      %s99 = sphi 0, %s98
      %s115 = sphi 0, %s99
    $region4: #{tpu_custom_call.1} parent=1 // loop_header_branch
      %20 = sbr.rel (%p18) target = $region8
    $region5: #{tpu_custom_call.1} parent=1 // loop_body
      %s22 = ssub.s32 %s17, 1
      %s23 = ssub.s32 %s17, 2
      %s30 = sadd.s32 1, %s25
      %p31 = scmp.ge.s32.totalorder %s30, 1
      %s32 = scalar_select %p31, 0, %s30
      %s33 = sadd.s32 1, %s24
      %s34 = scalar_select %p31, %s33, %s24
      %p35 = scmp.ge.s32.totalorder %s34, 2
      %s36 = scalar_select %p35, 0, %s34
      %s37 = sadd.s32 %s24, %s25
      %s38 = sadd.s32 %s36, %s32
      %s39 = ssub.s32 %s37, %s38
      %p40 = scmp.eq.s32.totalorder %s39, 0
      %s42 = sadd.s32 %s41, 1
      %s43 = scalar_select %p40, %s41, %s42
      %p46 = pneg %p40
      %p47 = scmp.eq.s32.totalorder %s17, 1
      %p48 = por %p46, %p47
      %p49 = scmp.ne.s32.totalorder %s41, %s44
      %p50 = scmp.eq.s32.totalorder %s17, 0
      %p51 = por %p49, %p50
      %p52 = scmp.ne.s32.totalorder %s41, %s44
      %p53 = scmp.eq.s32.totalorder %s22, 1
      %p54 = por %p52, %p53
      %p55 = scmp.ne.s32.totalorder %s44, %s45
      %p56 = scmp.eq.s32.totalorder %s22, 0
      %p57 = por %p55, %p56
      %p58 = scmp.ne.s32.totalorder %s44, %s45
      %p59 = scmp.eq.s32.totalorder %s23, 1
      %p60 = por %p58, %p59
      %p62 = scmp.ne.s32.totalorder %s45, %s61
      %p63 = scmp.eq.s32.totalorder %s23, 0
      %p64 = por %p62, %p63
      %s65 = sadd.s32 %s24, %s25
      %s66 = sadd.s32 %s36, %s32
      %s67 = ssub.s32 %s65, %s66
      %p68 = scmp.eq.s32.totalorder %s67, 0
      %s70 = sadd.s32 %s69, 1
      %s71 = scalar_select %p68, %s69, %s70
      %p74 = pneg %p68
      %p75 = scmp.eq.s32.totalorder %s17, 1
      %p76 = por %p74, %p75
      %p77 = scmp.ne.s32.totalorder %s69, %s72
      %p78 = scmp.eq.s32.totalorder %s17, 0
      %p79 = por %p77, %p78
      %p80 = scmp.ne.s32.totalorder %s69, %s72
      %p81 = scmp.eq.s32.totalorder %s22, 1
      %p82 = por %p80, %p81
      %p83 = scmp.ne.s32.totalorder %s72, %s73
      %p84 = scmp.eq.s32.totalorder %s22, 0
      %p85 = por %p83, %p84
      %p86 = scmp.ne.s32.totalorder %s72, %s73
      %p87 = scmp.eq.s32.totalorder %s23, 1
      %p88 = por %p86, %p87
      %p90 = scmp.ne.s32.totalorder %s73, %s89
      %p91 = scmp.eq.s32.totalorder %s23, 0
      %p92 = por %p90, %p91
      %s93 = ssub.s32 %s24, %s36
      %p94 = scmp.eq.s32.totalorder %s93, 0
      %s96 = sadd.s32 %s95, 1
      %s97 = scalar_select %p94, %s95, %s96
      %p100 = pneg %p94
      %p101 = scmp.eq.s32.totalorder %s17, 1
      %p102 = por %p100, %p101
      %p103 = scmp.ne.s32.totalorder %s95, %s98
      %p104 = scmp.eq.s32.totalorder %s17, 0
      %p105 = por %p103, %p104
      %p106 = scmp.ne.s32.totalorder %s95, %s98
      %p107 = scmp.eq.s32.totalorder %s22, 1
      %p108 = por %p106, %p107
      %p109 = scmp.ne.s32.totalorder %s98, %s99
      %p110 = scmp.eq.s32.totalorder %s22, 0
      %p111 = por %p109, %p110
      %p112 = scmp.ne.s32.totalorder %s98, %s99
      %p113 = scmp.eq.s32.totalorder %s23, 1
      %p114 = por %p112, %p113
      %p116 = scmp.ne.s32.totalorder %s99, %s115
      %p117 = scmp.eq.s32.totalorder %s23, 0
      %p118 = por %p116, %p117
      %p119 = scmp.le.s32.totalorder 1, %s17
      %p120 = scmp.lt.s32.totalorder %s17, 3
      %p121 = pnand %p119, %p120
      %p122 = pneg %p121
      // Predicated region
      $region9: #{tpu_custom_call.1} parent=5 // pred_check
        _
      $region10: #{tpu_custom_call.1} parent=5 // pred_check_branch
        %124 = sbr.rel (%p121) target = $region12
      $region11: #{tpu_custom_call.1} parent=5 // pred_region
        %s125 = ssub.s32 %s17, 1
      $region12: #{tpu_custom_call.1} parent=5 // pred_fallthru
        _
      %p126 = scmp.lt.s32.totalorder %s17, 2
      // Predicated region
      $region13: #{tpu_custom_call.1} parent=5 // pred_check
        %p127 = pneg %p126
      $region14: #{tpu_custom_call.1} parent=5 // pred_check_branch
        %129 = sbr.rel (%p127) target = $region16
      $region15: #{tpu_custom_call.1} parent=5 // pred_region
        // Predicated region
        $region17: #{tpu_custom_call.1} parent=15 // pred_check
          %p130 = pneg %p51
        $region18: #{tpu_custom_call.1} parent=15 // pred_check_branch
          %132 = sbr.rel (%p130) target = $region20
        $region19: #{tpu_custom_call.1} parent=15 // pred_region
          %s133 = sand.u32 %s41, 1
          %s134 = scalar_lea.sflag [#allocation3], %s133
          %s135 = sand.u32 %s41, 1
          %s136 = smul.addr %s135, 16
          %s137 = scalar_lea.vmem [#allocation2], %s136
          %s138 = sadd.s32 %s24, %s25
          %s139 = smul.u32 2, %s138
          %s141 = ssub.s32 256, 256
          %142 = vsyncadd %s134, %s141
          %s143 = smul.addr %s139, 128
          %s144 = scalar_lea.hbm %s0, %s143
          %s145 = sshll.u32 %s137, 4
          %s146 = int_to_ptr.vmem [resolvable:$true] %s145
          %151 = dma.hbm_to_vmem [thread:$0]  %s144, 256, %s146, %s134, 128, 128, 8
        $region20: #{tpu_custom_call.1} parent=15 // pred_fallthru
          _
        // Predicated region
        $region21: #{tpu_custom_call.1} parent=15 // pred_check
          %p152 = pneg %p79
        $region22: #{tpu_custom_call.1} parent=15 // pred_check_branch
          %154 = sbr.rel (%p152) target = $region24
        $region23: #{tpu_custom_call.1} parent=15 // pred_region
          %s155 = sand.u32 %s69, 1
          %s156 = scalar_lea.sflag [#allocation6], %s155
          %s157 = sand.u32 %s69, 1
          %s158 = smul.addr %s157, 16
          %s159 = scalar_lea.vmem [#allocation5], %s158
          %s160 = sadd.s32 %s24, %s25
          %s161 = smul.u32 2, %s160
          %s163 = ssub.s32 256, 256
          %164 = vsyncadd %s156, %s163
          %s165 = smul.addr %s161, 128
          %s166 = scalar_lea.hbm %s1, %s165
          %s167 = sshll.u32 %s159, 4
          %s168 = int_to_ptr.vmem [resolvable:$true] %s167
          %173 = dma.hbm_to_vmem [thread:$0]  %s166, 256, %s168, %s156, 128, 128, 8
        $region24: #{tpu_custom_call.1} parent=15 // pred_fallthru
          _
      $region16: #{tpu_custom_call.1} parent=5 // pred_fallthru
        _
      %p174 = scmp.le.s32.totalorder 1, %s17
      %p175 = scmp.lt.s32.totalorder %s17, 3
      %p176 = pnand %p174, %p175
      %p177 = pneg %p176
      // Predicated region
      $region25: #{tpu_custom_call.1} parent=5 // pred_check
        _
      $region26: #{tpu_custom_call.1} parent=5 // pred_check_branch
        %179 = sbr.rel (%p176) target = $region28
      $region27: #{tpu_custom_call.1} parent=5 // pred_region
        %s180 = ssub.s32 %s17, 1
        %s181 = sand.u32 %s44, 1
        %s182 = scalar_lea.sflag [#allocation3], %s181
        %s183 = sand.u32 %s44, 1
        %s184 = smul.addr %s183, 16
        %s185 = scalar_lea.vmem [#allocation2], %s184
        // Predicated region
        $region29: #{tpu_custom_call.1} parent=27 // pred_check
          %p186 = pneg %p57
        $region30: #{tpu_custom_call.1} parent=27 // pred_check_branch
          %188 = sbr.rel (%p186) target = $region32
        $region31: #{tpu_custom_call.1} parent=27 // pred_region
          %189 = dma.done %s182, 256
        $region32: #{tpu_custom_call.1} parent=27 // pred_fallthru
          _
        %s190 = sand.u32 %s72, 1
        %s191 = scalar_lea.sflag [#allocation6], %s190
        %s192 = sand.u32 %s72, 1
        %s193 = smul.addr %s192, 16
        %s194 = scalar_lea.vmem [#allocation5], %s193
        // Predicated region
        $region33: #{tpu_custom_call.1} parent=27 // pred_check
          %p195 = pneg %p85
        $region34: #{tpu_custom_call.1} parent=27 // pred_check_branch
          %197 = sbr.rel (%p195) target = $region36
        $region35: #{tpu_custom_call.1} parent=27 // pred_region
          %198 = dma.done %s191, 256
        $region36: #{tpu_custom_call.1} parent=27 // pred_fallthru
          _
        %s199 = sand.u32 %s44, 1
        %s200 = scalar_lea.sflag [#allocation3], %s199
        %s201 = sand.u32 %s44, 1
        %s202 = smul.addr %s201, 16
        %s203 = scalar_lea.vmem [#allocation2], %s202
        %p204 = pneg %p57
        %p205 = pneg %p54
        %s206 = sand.u32 %s72, 1
        %s207 = scalar_lea.sflag [#allocation6], %s206
        %s208 = sand.u32 %s72, 1
        %s209 = smul.addr %s208, 16
        %s210 = scalar_lea.vmem [#allocation5], %s209
        %p211 = pneg %p85
        %p212 = pneg %p82
        %p213 = pneg %p111
        %p214 = pneg %p108
        %s215 = sand.u32 %s98, 1
        %s216 = scalar_lea.sflag [#allocation4], %s215
        %s217 = sand.u32 %s98, 1
        %s218 = smul.addr %s217, 24
        %s219 = scalar_lea.vmem [#allocation7], %s218
        %s220 = sadd.s32 %s26, %s27
        %s221 = smul.u32 2, %s220
        %s222 = sadd.s32 %s26, %s27
        %s223 = smul.u32 2, %s222
        %p224 = scmp.eq.s32.totalorder %s27, 0
        // Predicated region
        $region37: #{tpu_custom_call.1} parent=27 // pred_check
          %p225 = pneg %p224
        $region38: #{tpu_custom_call.1} parent=27 // pred_check_branch
          %227 = sbr.rel (%p225) target = $region40
        $region39: #{tpu_custom_call.1} parent=27 // pred_region
          %228 = vst [vmem:[%s219] sm:$0xff] 0.0
          %229 = vst [vmem:[%s219 + $0x8] sm:$0xff] 0.0
          %230 = vst [vmem:[%s219 + $0x10] sm:$0xff] 0.0
        $region40: #{tpu_custom_call.1} parent=27 // pred_fallthru
          _
        %v231 = vld [vmem:[%s185] sm:$0xff]
        %v232 = vld [vmem:[%s185 + $0x8] sm:$0xff]
        %v233 = vld [vmem:[%s194] sm:$0xff]
        %v234 = vld [vmem:[%s194 + $0x8] sm:$0xff]
        %v235 = vand.u32 2147483647, %v231
        %v236 = vand.u32 2147483647, %v232
        %v237 = vsub.f32 0.0, %v235
        %v238 = vsub.f32 0.0, %v236
        %v239 = vmul.f32 %v237, 1.442695
        %v240 = vpow.pop %v239
        %v241 = vmul.f32 %v238, 1.442695
        %v242 = vpow.pop %v241
        %v243 = vmax.f32 %v231, 0.0
        %v244 = vmax.f32 %v232, 0.0
        %v245 = vadd.f32 %v240, 1.0
        %v246 = vadd.f32 %v242, 1.0
        %v247 = vlog2.pop %v245
        %v248 = vmul.f32 %v247, 0.6931472
        %v249 = vlog2.pop %v246
        %v250 = vmul.f32 %v249, 0.6931472
        %v251 = vadd.f32 %v243, %v248
        %v252 = vadd.f32 %v244, %v250
        %v253 = vsub.f32 %v231, %v251
        %v254 = vsub.f32 %v232, %v252
        %v255 = vmul.f32 %v253, 1.442695
        %v256 = vpow.pop %v255
        %v257 = vmul.f32 %v254, 1.442695
        %v258 = vpow.pop %v257
        %vm259 = vcmp.gt.f32.partialorder %v233, 0.0
        %vm260 = vcmp.gt.f32.partialorder %v234, 0.0
        %v261 = vsel %vm259, 0.96, 0.04
        %v262 = vsel %vm260, 0.96, 0.04
        %v263 = vmul.f32 %v233, %v231
        %v264 = vmul.f32 %v234, %v232
        %v265 = vsub.f32 %v251, %v263
        %v266 = vsub.f32 %v252, %v264
        %v267 = vmul.f32 %v261, %v265
        %v268 = vmul.f32 %v262, %v266
        %v269 = vld [vmem:[%s219] sm:$0xff]
        %v270 = vmul.f32 %v256, %v233
        %v271 = vmul.f32 %v258, %v234
        %v272 = vadd.f32 %v270, %v271
        %v273 = vadd.f32 %v269, %v272
        %274 = vst [vmem:[%s219] sm:$0xff] %v273
        %s275 = scalar_lea.vmem %s219, 8 [#allocation7]
        %v276 = vld [vmem:[%s275] sm:$0xff]
        %v277 = vadd.f32 %v256, %v233
        %v278 = vadd.f32 %v258, %v234
        %v279 = vadd.f32 %v277, %v278
        %v280 = vadd.f32 %v276, %v279
        %281 = vst [vmem:[%s275] sm:$0xff] %v280
        %s282 = scalar_lea.vmem %s219, 16 [#allocation7]
        %v283 = vld [vmem:[%s282] sm:$0xff]
        %v284 = vadd.f32 %v267, %v268
        %v285 = vadd.f32 %v283, %v284
        %286 = vst [vmem:[%s282] sm:$0xff] %v285
        %s287 = sand.u32 %s98, 1
        %s288 = scalar_lea.sflag [#allocation4], %s287
        %s289 = sand.u32 %s98, 1
        %s290 = smul.addr %s289, 24
        %s291 = scalar_lea.vmem [#allocation7], %s290
        // Predicated region
        $region41: #{tpu_custom_call.1} parent=27 // pred_check
          %p292 = pneg %p108
        $region42: #{tpu_custom_call.1} parent=27 // pred_check_branch
          %294 = sbr.rel (%p292) target = $region44
        $region43: #{tpu_custom_call.1} parent=27 // pred_region
          %s296 = ssub.s32 384, 384
          %297 = vsyncadd %s288, %s296
          %s298 = smul.addr %s26, 3
          %s299 = smul.addr %s298, 128
          %s300 = scalar_lea.hbm %s2, %s299
          %s301 = sshll.u32 %s291, 4
          %s302 = int_to_ptr.vmem [resolvable:$true] %s301
          %307 = dma.vmem_to_hbm [thread:$0]  %s302, 384, %s300, %s288, 128, 128, 8
        $region44: #{tpu_custom_call.1} parent=27 // pred_fallthru
          _
      $region28: #{tpu_custom_call.1} parent=5 // pred_fallthru
        _
      %p308 = scmp.le.s32.totalorder 2, %s17
      // Predicated region
      $region45: #{tpu_custom_call.1} parent=5 // pred_check
        %p309 = pneg %p308
      $region46: #{tpu_custom_call.1} parent=5 // pred_check_branch
        %311 = sbr.rel (%p309) target = $region48
      $region47: #{tpu_custom_call.1} parent=5 // pred_region
        %s312 = ssub.s32 %s17, 2
        // Predicated region
        $region49: #{tpu_custom_call.1} parent=47 // pred_check
          %p313 = pneg %p114
        $region50: #{tpu_custom_call.1} parent=47 // pred_check_branch
          %315 = sbr.rel (%p313) target = $region52
        $region51: #{tpu_custom_call.1} parent=47 // pred_region
          %s316 = sand.u32 %s99, 1
          %s317 = scalar_lea.sflag [#allocation4], %s316
          %s318 = sand.u32 %s99, 1
          %s319 = smul.addr %s318, 24
          %s320 = scalar_lea.vmem [#allocation7], %s319
          %321 = dma.done %s317, 384
        $region52: #{tpu_custom_call.1} parent=47 // pred_fallthru
          _
      $region48: #{tpu_custom_call.1} parent=5 // pred_fallthru
        _
    $region6: #{tpu_custom_call.1} parent=1 // loop_footer
      %s21 = sadd.s32 1, %s17
    $region7: #{tpu_custom_call.1} parent=1 // loop_footer_branch
      %16 = sbr.rel target = $region3
    $region8: #{tpu_custom_call.1} parent=1 // loop_exit
      _
    %322 = vsyncpa [#allocation3], 1
    %s323 = scalar_lea.sflag [#allocation3], 1
    %324 = vsyncpa %s323, 1
    %325 = vsyncpa [#allocation6], 1
    %s326 = scalar_lea.sflag [#allocation6], 1
    %327 = vsyncpa %s326, 1
    %328 = vsyncpa [#allocation4], 1
    %s329 = scalar_lea.sflag [#allocation4], 1
    %330 = vsyncpa %s329, 1

</llo_original>
